<compile_context>
chip_gen: v7x
topology: tpu7x:2x2x1
jax: 0.10.0
libtpu: 0.0.40
codegen_flags: <defaults>
</compile_context>

<pallas_src>
import jax
import jax.numpy as jnp
from jax.experimental import pallas as pl
from jax.experimental.pallas import tpu as pltpu


LANE = 128        # lane width (last dim of every tile)
MAX_TM = 2048     # max rows per block: (2048, 128) f32 = 1 MiB per input


def _make_kernel(tm: int, valid_rows: int, needs_mask: bool):
    """Kernel producing a (1, LANE) partial sum of e * tanh(e/2) per block."""

    def kernel(pred_ref, tgt_ref, out_ref):
        e = tgt_ref[...].astype(jnp.float32) - pred_ref[...].astype(jnp.float32)
        val = e * jnp.tanh(0.5 * e)          # == e * (2*sigmoid(e) - 1)
        if needs_mask:
            # Last block may extend past the real row count; zero those rows.
            row0 = pl.program_id(0) * tm
            rows = row0 + jax.lax.broadcasted_iota(jnp.int32, val.shape, 0)
            val = jnp.where(rows < valid_rows, val, jnp.float32(0.0))
        out_ref[...] = jnp.sum(val, axis=0, keepdims=True)   # (1, LANE)

    return kernel


def wavebender_loss(prediction: jax.Array, targets: jax.Array) -> jax.Array:
    """Pallas implementation of WaveBenderLoss.forward (XSigmoid loss)."""
    assert prediction.shape == targets.shape, "prediction/targets shape mismatch"
    n_elems = prediction.size
    if n_elems == 0:
        # mean of an empty tensor
        return jnp.float32(float("nan"))

    pred_flat = prediction.reshape(-1)
    tgt_flat = targets.reshape(-1)

    n_rows = n_elems // LANE          # full 128-wide rows
    rem = n_elems - n_rows * LANE     # ragged sub-lane tail (< 128 elems)

    total = jnp.float32(0.0)

    if n_rows > 0:
        if rem:
            pred_main = pred_flat[: n_rows * LANE]
            tgt_main = tgt_flat[: n_rows * LANE]
        else:
            pred_main, tgt_main = pred_flat, tgt_flat
        pred2d = pred_main.reshape(n_rows, LANE)
        tgt2d = tgt_main.reshape(n_rows, LANE)

        if n_rows <= MAX_TM:
            # Block equals the full row extent -> always a legal block shape,
            # no masking needed.
            tm = n_rows
            needs_mask = False
        else:
            tm = MAX_TM
            needs_mask = (n_rows % tm) != 0

        num_blocks = pl.cdiv(n_rows, tm)

        partials = pl.pallas_call(
            _make_kernel(tm, n_rows, needs_mask),
            out_shape=jax.ShapeDtypeStruct((num_blocks, LANE), jnp.float32),
            grid=(num_blocks,),
            in_specs=[
                pl.BlockSpec((tm, LANE), lambda i: (i, 0)),
                pl.BlockSpec((tm, LANE), lambda i: (i, 0)),
            ],
            out_specs=pl.BlockSpec((1, LANE), lambda i: (i, 0)),
            compiler_params=pltpu.CompilerParams(
                dimension_semantics=("parallel",),
            ),
        )(pred2d, tgt2d)

        total = total + jnp.sum(partials, dtype=jnp.float32)

    if rem:
        # Tiny ragged tail (< 128 elems) handled outside the kernel to avoid
        # any full-array pad/copy.
        e_t = (tgt_flat[n_rows * LANE:].astype(jnp.float32)
               - pred_flat[n_rows * LANE:].astype(jnp.float32))
        total = total + jnp.sum(e_t * jnp.tanh(0.5 * e_t))

    return (total / jnp.float32(n_elems)).astype(jnp.float32)


def _reference_loss(prediction, targets):
    e = targets.astype(jnp.float32) - prediction.astype(jnp.float32)
    return jnp.mean(e * (2.0 * jax.nn.sigmoid(e) - 1.0))


if __name__ == "__main__":
    key = jax.random.PRNGKey(0)
    k1, k2 = jax.random.split(key)

    # Mel-spectrogram-like shapes: (batch, channels, n_mels, frames)
    shape = (2, 4, 16, 16)
    prediction = jax.random.normal(k1, shape, dtype=jnp.float32)
    targets = jax.random.normal(k2, shape, dtype=jnp.float32)

    loss = wavebender_loss(prediction, targets)
    loss = jax.block_until_ready(loss)

    ref = jax.block_until_ready(_reference_loss(prediction, targets))
    assert jnp.allclose(loss, ref, atol=1e-5, rtol=1e-5), (loss, ref)

    print("KERNEL_OK")
</pallas_src>

<mosaic_0001>
module attributes {stable_mosaic.version = 11 : i64} {
  func.func @kernel(%arg0: i32, %arg1: memref<16x128xf32, #tpu.memory_space<vmem>>, %arg2: memref<16x128xf32, #tpu.memory_space<vmem>>, %arg3: memref<1x128xf32, #tpu.memory_space<vmem>>) attributes {dimension_semantics = [#tpu.dimension_semantics<parallel>], iteration_bounds = array<i64: 1>, scalar_prefetch = 0 : i64, scratch_operands = 0 : i64, tpu.core_type = #tpu.core_type<tc>, window_params = [{transform_indices = @transform_0, window_bounds = array<i64: 16, 128>}, {transform_indices = @transform_1, window_bounds = array<i64: 16, 128>}, {transform_indices = @transform_2, window_bounds = array<i64: 1, 128>}]} {
    %c0 = arith.constant 0 : index
    %c0_0 = arith.constant 0 : index
    %0 = vector.load %arg2[%c0, %c0_0] : memref<16x128xf32, #tpu.memory_space<vmem>>, vector<16x128xf32>
    %c0_1 = arith.constant 0 : index
    %c0_2 = arith.constant 0 : index
    %1 = vector.load %arg1[%c0_1, %c0_2] : memref<16x128xf32, #tpu.memory_space<vmem>>, vector<16x128xf32>
    %2 = arith.subf %0, %1 : vector<16x128xf32>
    %cst = arith.constant 5.000000e-01 : f32
    %3 = vector.broadcast %cst : f32 to vector<16x128xf32>
    %4 = arith.mulf %3, %2 : vector<16x128xf32>
    %5 = math.tanh %4 : vector<16x128xf32>
    %6 = arith.mulf %2, %5 : vector<16x128xf32>
    %cst_3 = arith.constant dense<0.000000e+00> : vector<128xf32>
    %7 = vector.multi_reduction <add>, %6, %cst_3 [0] : vector<16x128xf32> to vector<128xf32>
    %8 = vector.shape_cast %7 : vector<128xf32> to vector<1x128xf32>
    %c0_4 = arith.constant 0 : index
    %c0_5 = arith.constant 0 : index
    %9 = vector.load %arg3[%c0_4, %c0_5] : memref<1x128xf32, #tpu.memory_space<vmem>>, vector<1x128xf32>
    tpu.vector_store %arg3[%c0_4, %c0_5], %8 {strides = array<i32>} : memref<1x128xf32, #tpu.memory_space<vmem>>, vector<1x128xf32>,
    return
  }
  func.func @transform_0(%arg0: i32) -> (i32, i32) {
    %c0_i32 = arith.constant 0 : i32
    %c0_i32_0 = arith.constant 0 : i32
    return %arg0, %c0_i32 : i32, i32
  }
  func.func @transform_1(%arg0: i32) -> (i32, i32) {
    %c0_i32 = arith.constant 0 : i32
    %c0_i32_0 = arith.constant 0 : i32
    return %arg0, %c0_i32 : i32, i32
  }
  func.func @transform_2(%arg0: i32) -> (i32, i32) {
    %c0_i32 = arith.constant 0 : i32
    %c0_i32_0 = arith.constant 0 : i32
    return %arg0, %c0_i32 : i32, i32
  }
}

</mosaic_0001>

<llo_original>
// kernel: tpu_custom_call.1
$region0: #{tpu_custom_call.1}
  #allocation0 [shape = 'u32[]', space=smem, size = 0x4, offset = 0x4, fixed_abs, tag = 'smem constant byte address 0x4 - core index']
  #allocation1 [shape = 'u32[144,128]{1,0:T(1,128)}', space=vmem, size = 0x12000, scoped, tag = 'internal scratch']
  %s0 = inlined_call_operand.hbm [shape: f32[16,128], index: 0, kind: input, shape index: {}]
  %s1 = inlined_call_operand.hbm [shape: f32[16,128], index: 1, kind: input, shape index: {}]
  %s2 = inlined_call_operand.hbm [shape: f32[1,128], index: 2, kind: output, shape index: {}]
  %s3 = sld [smem:[#allocation0]]
  $region26: #{tpu_custom_call.1} parent=0
    _
  %s5 = ssub.s32 1, %s3
  %s6 = scalar_select 0, %s5, %s3
  $region1: #{tpu_custom_call.1} parent=0
    #allocation2 [shape = 'u8[8192]{0}', space=vmem, size = 0x2000, scoped, tag = 'input window, operand 0, single buffered']
    #allocation3 [shape = 's32[1]{0}', space=sflag, size = 0x4, scoped, tag = 'scoped memory for tpu_custom_call.1']
    #allocation4 [shape = 's32[1]{0}', space=sflag, size = 0x4, scoped, tag = 'scoped memory for tpu_custom_call.1']
    #allocation5 [shape = 'u8[8192]{0}', space=vmem, size = 0x2000, scoped, tag = 'input window, operand 1, single buffered']
    #allocation6 [shape = 's32[1]{0}', space=sflag, size = 0x4, scoped, tag = 'scoped memory for tpu_custom_call.1']
    #allocation7 [shape = 'u8[512]{0}', space=vmem, size = 0x400, scoped, tag = 'output window, operand 0, single buffered']
    %7 = vsyncpa [#allocation3], 0
    %8 = vsyncpa [#allocation6], 0
    %9 = vsyncpa [#allocation4], 0
    // Predicated region
    $region2: #{tpu_custom_call.1} parent=1 // pred_check
      _
    $region3: #{tpu_custom_call.1} parent=1 // pred_check_branch
      %11 = sbr.rel (0) target = $region5
    $region4: #{tpu_custom_call.1} parent=1 // pred_region
      %s13 = ssub.s32 256, 256
      %14 = vsyncadd [#allocation3], %s13
      %s15 = sshll.u32 [#allocation2], 4
      %s16 = int_to_ptr.vmem [resolvable:$true] %s15
      %21 = dma.hbm_to_vmem [thread:$0]  %s0, 256, %s16, [#allocation3], 128, 128, 8
    $region5: #{tpu_custom_call.1} parent=1 // pred_fallthru
      _
    // Predicated region
    $region6: #{tpu_custom_call.1} parent=1 // pred_check
      _
    $region7: #{tpu_custom_call.1} parent=1 // pred_check_branch
      %23 = sbr.rel (0) target = $region9
    $region8: #{tpu_custom_call.1} parent=1 // pred_region
      %s25 = ssub.s32 256, 256
      %26 = vsyncadd [#allocation6], %s25
      %s27 = sshll.u32 [#allocation5], 4
      %s28 = int_to_ptr.vmem [resolvable:$true] %s27
      %33 = dma.hbm_to_vmem [thread:$0]  %s1, 256, %s28, [#allocation6], 128, 128, 8
    $region9: #{tpu_custom_call.1} parent=1 // pred_fallthru
      _
    // Predicated region
    $region10: #{tpu_custom_call.1} parent=1 // pred_check
      _
    $region11: #{tpu_custom_call.1} parent=1 // pred_check_branch
      %35 = sbr.rel (0) target = $region13
    $region12: #{tpu_custom_call.1} parent=1 // pred_region
      %36 = dma.done [#allocation3], 256
    $region13: #{tpu_custom_call.1} parent=1 // pred_fallthru
      _
    // Predicated region
    $region14: #{tpu_custom_call.1} parent=1 // pred_check
      _
    $region15: #{tpu_custom_call.1} parent=1 // pred_check_branch
      %38 = sbr.rel (0) target = $region17
    $region16: #{tpu_custom_call.1} parent=1 // pred_region
      %39 = dma.done [#allocation6], 256
    $region17: #{tpu_custom_call.1} parent=1 // pred_fallthru
      _
    %v40 = vld [vmem:[#allocation5] sm:$0xff]
    %v41 = vld [vmem:[#allocation5 + $0x8] sm:$0xff]
    %v42 = vld [vmem:[#allocation2] sm:$0xff]
    %v43 = vld [vmem:[#allocation2 + $0x8] sm:$0xff]
    %v44 = vsub.f32 %v40, %v42
    %v45 = vsub.f32 %v41, %v43
    %v46 = vmul.f32 %v44, 0.5
    %v47 = vmul.f32 %v45, 0.5
    %v48 = vtanh.pop %v46
    %v49 = vtanh.pop %v47
    %v50 = vmul.f32 %v44, %v48
    %v51 = vmul.f32 %v45, %v49
    %v52 = vadd.f32 %v50, %v51
    %v53 = vrot.slane %v52, 4
    %v54 = vadd.f32 %v52, %v53
    %v55 = vrot.slane %v54, 2
    %v56 = vadd.f32 %v54, %v55
    %v57 = vrot.slane %v56, 1
    %v58 = vadd.f32 %v56, %v57
    %59 = vst [vmem:[#allocation7] sm:$0x1] %v58
    // Predicated region
    $region18: #{tpu_custom_call.1} parent=1 // pred_check
      _
    $region19: #{tpu_custom_call.1} parent=1 // pred_check_branch
      %61 = sbr.rel (0) target = $region21
    $region20: #{tpu_custom_call.1} parent=1 // pred_region
      %s63 = ssub.s32 16, 16
      %64 = vsyncadd [#allocation4], %s63
      %s66 = sshll.u32 [#allocation7], 4
      %s67 = int_to_ptr.vmem [resolvable:$true] %s66
      %69 = dma.vmem_to_hbm [thread:$0]  %s67, 16, %s2, [#allocation4]
    $region21: #{tpu_custom_call.1} parent=1 // pred_fallthru
      _
    // Predicated region
    $region22: #{tpu_custom_call.1} parent=1 // pred_check
      _
    $region23: #{tpu_custom_call.1} parent=1 // pred_check_branch
      %71 = sbr.rel (0) target = $region25
    $region24: #{tpu_custom_call.1} parent=1 // pred_region
      %72 = dma.done [#allocation4], 16
    $region25: #{tpu_custom_call.1} parent=1 // pred_fallthru
      _
    %73 = vsyncpa [#allocation3], 1
    %74 = vsyncpa [#allocation6], 1
    %75 = vsyncpa [#allocation4], 1

</llo_original>
